<compile_context>
chip_gen: v7x
topology: tpu7x:2x2x1
jax: 0.10.0
libtpu: 0.0.40
codegen_flags: <defaults>
</compile_context>

<pallas_src>
import math
import functools

import jax
import jax.numpy as jnp
from jax.experimental import pallas as pl
from jax.experimental.pallas import tpu as pltpu


def _soft_triple_kernel(x_ref, w_ref, rw_ref, o_ref, *, c_pad, num_proxies,
                        inv_gamma):
    eps = 1e-12
    x = x_ref[...]                      # [TB, D]  f32
    w = w_ref[...]                      # [D, P*Cp] (bf16 or f32), proxy-major

    # Per-row inverse L2 norm of x (EUP rsqrt; no normalized x copy).
    xf = x.astype(jnp.float32)
    rx = jax.lax.rsqrt(
        jnp.maximum(jnp.sum(xf * xf, axis=1, keepdims=True), eps))  # [TB, 1]

    # MXU matmul on raw (possibly bf16) operands, f32 accumulation, then scale
    # by rx (rows) and the precomputed per-column inverse norms rw (columns).
    sims = jnp.dot(xf.astype(w.dtype), w,
                   preferred_element_type=jnp.float32)              # [TB, P*Cp]
    sims = sims * rx * rw_ref[...]      # cosine similarities

    Cp, P = c_pad, num_proxies
    # Fused, numerically-stable softmax over the proxy axis.
    # Pass 1: running max across proxies.
    m = sims[:, 0:Cp]
    for p in range(1, P):
        m = jnp.maximum(m, sims[:, p * Cp:(p + 1) * Cp])
    # Pass 2: running denominator and numerator (prob-weighted sims).
    denom = jnp.zeros_like(m)
    num = jnp.zeros_like(m)
    for p in range(P):
        s = sims[:, p * Cp:(p + 1) * Cp]
        e = jnp.exp(inv_gamma * (s - m))
        denom = denom + e
        num = num + e * s

    o_ref[...] = (num * pl.reciprocal(denom, approx=True)).astype(o_ref.dtype)


def prepare_weight(weight, out_features, num_proxies,
                   compute_dtype=jnp.bfloat16):
    """One-time parameter preparation (cache the result in a real model).

    weight: [D, C*P] class-major (PyTorch layout).
    Returns:
      w_pm : [D, P*Cp] proxy-major, classes zero-padded to Cp = 128*ceil(C/128),
             cast to `compute_dtype` for the MXU.
      rw   : [1, P*Cp] f32 per-column inverse L2 norms (computed from f32).
      Cp   : padded class count.
    Column L2-normalization commutes with the permutation / zero padding, so
    the kernel math is exactly the PyTorch forward.
    """
    D = weight.shape[0]
    C, P = out_features, num_proxies
    Cp = int(pl.cdiv(C, 128)) * 128
    w = jnp.transpose(weight.reshape(D, C, P), (0, 2, 1))   # [D, P, C]
    w = jnp.pad(w, ((0, 0), (0, 0), (0, Cp - C)))           # [D, P, Cp]
    w = w.reshape(D, P * Cp)
    rw = jax.lax.rsqrt(
        jnp.maximum(jnp.sum(w.astype(jnp.float32) ** 2, axis=0, keepdims=True),
                    1e-12))
    return w.astype(compute_dtype), rw, Cp


def soft_triple_linear(x, w_prepared, rw, *, out_features, num_proxies,
                       gamma=0.1, block_b=128):
    """x: [B, D] f32; w_prepared/rw from prepare_weight."""
    B, D = x.shape
    P = num_proxies
    Cp = w_prepared.shape[1] // P
    assert w_prepared.shape[0] == D and rw.shape == (1, P * Cp)

    TB = min(block_b, B)
    grid_b = int(pl.cdiv(B, TB))

    kernel = functools.partial(
        _soft_triple_kernel,
        c_pad=Cp,
        num_proxies=P,
        inv_gamma=1.0 / gamma,
    )

    bytes_accessed = (x.size * x.dtype.itemsize
                      + w_prepared.size * w_prepared.dtype.itemsize
                      + rw.size * 4
                      + B * Cp * 4)

    out_padded = pl.pallas_call(
        kernel,
        out_shape=jax.ShapeDtypeStruct((B, Cp), jnp.float32),
        grid=(grid_b,),
        in_specs=[
            pl.BlockSpec((TB, D), lambda i: (i, 0)),        # batch-tiled x
            pl.BlockSpec((D, P * Cp), lambda i: (0, 0)),    # weight resident
            pl.BlockSpec((1, P * Cp), lambda i: (0, 0)),    # col inv-norms resident
        ],
        out_specs=pl.BlockSpec((TB, Cp), lambda i: (i, 0)),
        compiler_params=pltpu.CompilerParams(
            dimension_semantics=("parallel",),
            # Explicit, conservative scoped-VMEM budget (safe on v5e/v6e/v7x);
            # raise with headroom below 64 MiB physical when tiles grow.
            vmem_limit_bytes=32 * 1024 * 1024,
        ),
        cost_estimate=pl.CostEstimate(
            flops=2 * B * D * P * Cp,
            transcendentals=B * P * Cp,
            bytes_accessed=int(bytes_accessed),
        ),
    )(x, w_prepared, rw)

    if Cp != out_features:
        return out_padded[:, :out_features]
    return out_padded


def _reference(x, weight, out_features, num_proxies, gamma=0.1):
    """Pure-JAX replica of the PyTorch forward (original weight layout)."""
    eps = 1e-12
    w_norm = weight / jnp.maximum(
        jnp.linalg.norm(weight, axis=0, keepdims=True), eps)
    x_norm = x / jnp.maximum(jnp.linalg.norm(x, axis=1, keepdims=True), eps)
    sims = (x_norm @ w_norm).reshape(-1, out_features, num_proxies)
    prob = jax.nn.softmax(sims * (1.0 / gamma), axis=2)
    return jnp.sum(prob * sims, axis=2)


if __name__ == "__main__":
    # Small, module-consistent shapes (B chosen to exercise the batch grid).
    B, in_features, out_features, num_proxies = 256, 64, 16, 2
    gamma = 0.1

    key = jax.random.PRNGKey(0)
    kx, kw = jax.random.split(key)

    x = jax.random.normal(kx, (B, in_features), dtype=jnp.float32)

    # Deterministic kaiming_uniform_(a=sqrt(5)) equivalent for a
    # [in_features, out_features*num_proxies] tensor (fan_in = dim 1).
    fan_in = out_features * num_proxies
    bound = math.sqrt(1.0 / fan_in)
    weight = jax.random.uniform(
        kw, (in_features, out_features * num_proxies),
        minval=-bound, maxval=bound, dtype=jnp.float32)

    ref = _reference(x, weight, out_features, num_proxies, gamma)

    # f32 MXU path: tight check of kernel logic (approx reciprocal only source
    # of deviation beyond reassociation).
    w32, rw32, _ = prepare_weight(weight, out_features, num_proxies,
                                  compute_dtype=jnp.float32)
    out32 = soft_triple_linear(x, w32, rw32, out_features=out_features,
                               num_proxies=num_proxies, gamma=gamma)
    out32 = jax.block_until_ready(out32)
    assert out32.shape == (B, out_features)
    assert jnp.allclose(out32, ref, atol=2e-3, rtol=2e-3), "f32 mismatch"

    # bf16 MXU path (production config: half weight DMA, ~2x MXU throughput);
    # cosine sims lose ~3 decimal digits -> relaxed tolerance.
    wbf, rwbf, _ = prepare_weight(weight, out_features, num_proxies,
                                  compute_dtype=jnp.bfloat16)
    outbf = soft_triple_linear(x, wbf, rwbf, out_features=out_features,
                               num_proxies=num_proxies, gamma=gamma)
    outbf = jax.block_until_ready(outbf)
    assert outbf.shape == (B, out_features)
    assert jnp.allclose(outbf, ref, atol=3e-2, rtol=0.0), "bf16 mismatch"

    print("KERNEL_OK")
</pallas_src>

<mosaic_0001>
module attributes {stable_mosaic.version = 11 : i64} {
  func.func @_soft_triple_kernel(%arg0: i32, %arg1: memref<128x64xf32, #tpu.memory_space<vmem>>, %arg2: memref<64x256xf32, #tpu.memory_space<vmem>>, %arg3: memref<1x256xf32, #tpu.memory_space<vmem>>, %arg4: memref<128x128xf32, #tpu.memory_space<vmem>>) attributes {dimension_semantics = [#tpu.dimension_semantics<parallel>], iteration_bounds = array<i64: 2>, scalar_prefetch = 0 : i64, scratch_operands = 0 : i64, tpu.core_type = #tpu.core_type<tc>, window_params = [{transform_indices = @transform_0, window_bounds = array<i64: 128, 64>}, {pipeline_mode = #tpu.pipeline_mode<synchronous>, transform_indices = @transform_1, window_bounds = array<i64: 64, 256>}, {pipeline_mode = #tpu.pipeline_mode<synchronous>, transform_indices = @transform_2, window_bounds = array<i64: 1, 256>}, {transform_indices = @transform_3, window_bounds = array<i64: 128, 128>}]} {
    %c0 = arith.constant 0 : index
    %c0_0 = arith.constant 0 : index
    %0 = vector.load %arg1[%c0, %c0_0] : memref<128x64xf32, #tpu.memory_space<vmem>>, vector<128x64xf32>
    %c0_1 = arith.constant 0 : index
    %c0_2 = arith.constant 0 : index
    %1 = vector.load %arg2[%c0_1, %c0_2] : memref<64x256xf32, #tpu.memory_space<vmem>>, vector<64x256xf32>
    %2 = arith.mulf %0, %0 : vector<128x64xf32>
    %cst = arith.constant dense<0.000000e+00> : vector<128xf32>
    %3 = vector.multi_reduction <add>, %2, %cst [1] : vector<128x64xf32> to vector<128xf32>
    %4 = vector.shape_cast %3 : vector<128xf32> to vector<128x1xf32>
    %cst_3 = arith.constant 9.99999996E-13 : f32
    %5 = vector.broadcast %cst_3 : f32 to vector<128x1xf32>
    %6 = arith.maximumf %4, %5 : vector<128x1xf32>
    %7 = math.rsqrt %6 : vector<128x1xf32>
    %cst_4 = arith.constant dense<0.000000e+00> : vector<128x256xf32>
    %8 = tpu.matmul %0, %1, %cst_4 {dimension_numbers = #tpu.dot_dimension_numbers<[1], [0], [0], [1], [0, 0, 1, 1], [], []>} : vector<128x64xf32>, vector<64x256xf32>, vector<128x256xf32> -> vector<128x256xf32>
    %9 = vector.broadcast %7 : vector<128x1xf32> to vector<128x256xf32>
    %10 = arith.mulf %8, %9 : vector<128x256xf32>
    %c0_5 = arith.constant 0 : index
    %c0_6 = arith.constant 0 : index
    %11 = vector.load %arg3[%c0_5, %c0_6] : memref<1x256xf32, #tpu.memory_space<vmem>>, vector<1x256xf32>
    %12 = vector.broadcast %11 : vector<1x256xf32> to vector<128x256xf32>
    %13 = arith.mulf %10, %12 : vector<128x256xf32>
    %14 = vector.extract_strided_slice %13 {offsets = [0, 0], sizes = [128, 128], strides = [1, 1]} : vector<128x256xf32> to vector<128x128xf32>
    %15 = vector.extract_strided_slice %13 {offsets = [0, 128], sizes = [128, 128], strides = [1, 1]} : vector<128x256xf32> to vector<128x128xf32>
    %16 = arith.maximumf %14, %15 : vector<128x128xf32>
    %cst_7 = arith.constant 0.000000e+00 : f32
    %17 = vector.broadcast %cst_7 : f32 to vector<128x128xf32>
    %cst_8 = arith.constant 0.000000e+00 : f32
    %18 = vector.broadcast %cst_8 : f32 to vector<128x128xf32>
    %19 = vector.extract_strided_slice %13 {offsets = [0, 0], sizes = [128, 128], strides = [1, 1]} : vector<128x256xf32> to vector<128x128xf32>
    %20 = arith.subf %19, %16 : vector<128x128xf32>
    %cst_9 = arith.constant 1.000000e+01 : f32
    %21 = vector.broadcast %cst_9 : f32 to vector<128x128xf32>
    %22 = arith.mulf %21, %20 : vector<128x128xf32>
    %23 = math.exp %22 : vector<128x128xf32>
    %24 = arith.addf %17, %23 : vector<128x128xf32>
    %25 = arith.mulf %23, %19 : vector<128x128xf32>
    %26 = arith.addf %18, %25 : vector<128x128xf32>
    %27 = vector.extract_strided_slice %13 {offsets = [0, 128], sizes = [128, 128], strides = [1, 1]} : vector<128x256xf32> to vector<128x128xf32>
    %28 = arith.subf %27, %16 : vector<128x128xf32>
    %cst_10 = arith.constant 1.000000e+01 : f32
    %29 = vector.broadcast %cst_10 : f32 to vector<128x128xf32>
    %30 = arith.mulf %29, %28 : vector<128x128xf32>
    %31 = math.exp %30 : vector<128x128xf32>
    %32 = arith.addf %24, %31 : vector<128x128xf32>
    %33 = arith.mulf %31, %27 : vector<128x128xf32>
    %34 = arith.addf %26, %33 : vector<128x128xf32>
    %35 = tpu.reciprocal %32 {approx = true} : vector<128x128xf32> -> vector<128x128xf32>
    %36 = arith.mulf %34, %35 : vector<128x128xf32>
    %c0_11 = arith.constant 0 : index
    %c0_12 = arith.constant 0 : index
    %37 = vector.load %arg4[%c0_11, %c0_12] : memref<128x128xf32, #tpu.memory_space<vmem>>, vector<128x128xf32>
    tpu.vector_store %arg4[%c0_11, %c0_12], %36 {strides = array<i32>} : memref<128x128xf32, #tpu.memory_space<vmem>>, vector<128x128xf32>,
    return
  }
  func.func @transform_0(%arg0: i32) -> (i32, i32) {
    %c0_i32 = arith.constant 0 : i32
    %c0_i32_0 = arith.constant 0 : i32
    return %arg0, %c0_i32 : i32, i32
  }
  func.func @transform_1(%arg0: i32) -> (i32, i32) {
    %c0_i32 = arith.constant 0 : i32
    %c0_i32_0 = arith.constant 0 : i32
    %c0_i32_1 = arith.constant 0 : i32
    return %c0_i32, %c0_i32_0 : i32, i32
  }
  func.func @transform_2(%arg0: i32) -> (i32, i32) {
    %c0_i32 = arith.constant 0 : i32
    %c0_i32_0 = arith.constant 0 : i32
    %c0_i32_1 = arith.constant 0 : i32
    return %c0_i32, %c0_i32_0 : i32, i32
  }
  func.func @transform_3(%arg0: i32) -> (i32, i32) {
    %c0_i32 = arith.constant 0 : i32
    %c0_i32_0 = arith.constant 0 : i32
    return %arg0, %c0_i32 : i32, i32
  }
}

</mosaic_0001>

<llo_original>
// kernel: tpu_custom_call.1
$region0: #{tpu_custom_call.1}
  #allocation0 [shape = 'u32[]', space=smem, size = 0x4, offset = 0x4, fixed_abs, tag = 'smem constant byte address 0x4 - core index']
  #allocation1 [shape = 'u32[144,128]{1,0:T(1,128)}', space=vmem, size = 0x12000, scoped, tag = 'internal scratch']
  %s0 = inlined_call_operand.vmem [shape: f32[256,64], index: 0, kind: input, shape index: {}]
  %s1 = inlined_call_operand.vmem [shape: f32[64,256], index: 1, kind: input, shape index: {}]
  %s2 = inlined_call_operand.vmem [shape: f32[1,256], index: 2, kind: input, shape index: {}]
  %s3 = inlined_call_operand.hbm [shape: f32[256,128], index: 3, kind: output, shape index: {}]
  %s4 = sld [smem:[#allocation0]]
  $region45: #{tpu_custom_call.1} parent=0
    _
  %s6 = ssub.s32 1, %s4
  %s7 = scalar_select 0, %s6, %s4
  $region1: #{tpu_custom_call.1} parent=0
    #allocation2 [shape = 'u8[131072]{0}', space=vmem, size = 0x20000, scoped, tag = 'output window, operand 0']
    #allocation3 [shape = 's32[2]{0}', space=sflag, size = 0x8, scoped, tag = 'scoped memory for tpu_custom_call.1']
    %8 = vsyncpa [#allocation3], 0
    %s9 = scalar_lea.sflag [#allocation3], 1
    %10 = vsyncpa %s9, 0
    loop: start=0, step=1, limit=4
    $region2: #{tpu_custom_call.1} parent=1 // loop_pre_header
      _
    $region3: #{tpu_custom_call.1} parent=1 // loop_header
      %s12 = sphi 0, %s16
      %p13 = scmp.ge.s32.totalorder %s12, 4
      %s22 = sphi 0, %s24
      %s25 = sphi 0, %s22
      %s26 = sphi 0, %s25
      %s42 = sphi 0, %s26
      %s46 = sphi 0, %s46
      %s48 = sphi 0, %s46
      %s49 = sphi 0, %s48
      %s63 = sphi 0, %s49
      %s67 = sphi 0, %s67
      %s69 = sphi 0, %s67
      %s70 = sphi 0, %s69
      %s84 = sphi 0, %s70
      %s90 = sphi 0, %s92
      %s93 = sphi 0, %s90
      %s94 = sphi 0, %s93
      %s110 = sphi 0, %s94
    $region4: #{tpu_custom_call.1} parent=1 // loop_header_branch
      %15 = sbr.rel (%p13) target = $region8
    $region5: #{tpu_custom_call.1} parent=1 // loop_body
      %s17 = ssub.s32 %s12, 1
      %s18 = ssub.s32 %s12, 2
      %s19 = sadd.s32 %s12, 1
      %s20 = ssub.s32 %s12, %s19
      %p21 = scmp.eq.s32.totalorder %s20, 0
      %s23 = sadd.s32 %s22, 1
      %s24 = scalar_select %p21, %s22, %s23
      %p27 = pneg %p21
      %p28 = scmp.eq.s32.totalorder %s12, 1
      %p29 = por %p27, %p28
      %p30 = scmp.ne.s32.totalorder %s22, %s25
      %p31 = scmp.eq.s32.totalorder %s12, 0
      %p32 = por %p30, %p31
      %p33 = scmp.ne.s32.totalorder %s22, %s25
      %p34 = scmp.eq.s32.totalorder %s17, 1
      %p35 = por %p33, %p34
      %p36 = scmp.ne.s32.totalorder %s25, %s26
      %p37 = scmp.eq.s32.totalorder %s17, 0
      %p38 = por %p36, %p37
      %p39 = scmp.ne.s32.totalorder %s25, %s26
      %p40 = scmp.eq.s32.totalorder %s18, 1
      %p41 = por %p39, %p40
      %p43 = scmp.ne.s32.totalorder %s26, %s42
      %p44 = scmp.eq.s32.totalorder %s18, 0
      %p45 = por %p43, %p44
      %s47 = sadd.s32 %s46, 1
      %p50 = scmp.eq.s32.totalorder %s12, 1
      %p51 = scmp.ne.s32.totalorder %s46, %s48
      %p52 = scmp.eq.s32.totalorder %s12, 0
      %p53 = por %p51, %p52
      %p54 = scmp.ne.s32.totalorder %s46, %s48
      %p55 = scmp.eq.s32.totalorder %s17, 1
      %p56 = por %p54, %p55
      %p57 = scmp.ne.s32.totalorder %s48, %s49
      %p58 = scmp.eq.s32.totalorder %s17, 0
      %p59 = por %p57, %p58
      %p60 = scmp.ne.s32.totalorder %s48, %s49
      %p61 = scmp.eq.s32.totalorder %s18, 1
      %p62 = por %p60, %p61
      %p64 = scmp.ne.s32.totalorder %s49, %s63
      %p65 = scmp.eq.s32.totalorder %s18, 0
      %p66 = por %p64, %p65
      %s68 = sadd.s32 %s67, 1
      %p71 = scmp.eq.s32.totalorder %s12, 1
      %p72 = scmp.ne.s32.totalorder %s67, %s69
      %p73 = scmp.eq.s32.totalorder %s12, 0
      %p74 = por %p72, %p73
      %p75 = scmp.ne.s32.totalorder %s67, %s69
      %p76 = scmp.eq.s32.totalorder %s17, 1
      %p77 = por %p75, %p76
      %p78 = scmp.ne.s32.totalorder %s69, %s70
      %p79 = scmp.eq.s32.totalorder %s17, 0
      %p80 = por %p78, %p79
      %p81 = scmp.ne.s32.totalorder %s69, %s70
      %p82 = scmp.eq.s32.totalorder %s18, 1
      %p83 = por %p81, %p82
      %p85 = scmp.ne.s32.totalorder %s70, %s84
      %p86 = scmp.eq.s32.totalorder %s18, 0
      %p87 = por %p85, %p86
      %s88 = ssub.s32 %s12, %s19
      %p89 = scmp.eq.s32.totalorder %s88, 0
      %s91 = sadd.s32 %s90, 1
      %s92 = scalar_select %p89, %s90, %s91
      %p95 = pneg %p89
      %p96 = scmp.eq.s32.totalorder %s12, 1
      %p97 = por %p95, %p96
      %p98 = scmp.ne.s32.totalorder %s90, %s93
      %p99 = scmp.eq.s32.totalorder %s12, 0
      %p100 = por %p98, %p99
      %p101 = scmp.ne.s32.totalorder %s90, %s93
      %p102 = scmp.eq.s32.totalorder %s17, 1
      %p103 = por %p101, %p102
      %p104 = scmp.ne.s32.totalorder %s93, %s94
      %p105 = scmp.eq.s32.totalorder %s17, 0
      %p106 = por %p104, %p105
      %p107 = scmp.ne.s32.totalorder %s93, %s94
      %p108 = scmp.eq.s32.totalorder %s18, 1
      %p109 = por %p107, %p108
      %p111 = scmp.ne.s32.totalorder %s94, %s110
      %p112 = scmp.eq.s32.totalorder %s18, 0
      %p113 = por %p111, %p112
      %p114 = scmp.le.s32.totalorder 1, %s12
      %p115 = scmp.lt.s32.totalorder %s12, 3
      %p116 = pnand %p114, %p115
      %p117 = pneg %p116
      // Predicated region
      $region9: #{tpu_custom_call.1} parent=5 // pred_check
        _
      $region10: #{tpu_custom_call.1} parent=5 // pred_check_branch
        %119 = sbr.rel (%p116) target = $region12
      $region11: #{tpu_custom_call.1} parent=5 // pred_region
        %s120 = ssub.s32 %s12, 1
        // Predicated region
        $region13: #{tpu_custom_call.1} parent=11 // pred_check
          %p121 = pneg %p59
        $region14: #{tpu_custom_call.1} parent=11 // pred_check_branch
          %123 = sbr.rel (%p121) target = $region16
        $region15: #{tpu_custom_call.1} parent=11 // pred_region
          _
        $region16: #{tpu_custom_call.1} parent=11 // pred_fallthru
          _
        // Predicated region
        $region17: #{tpu_custom_call.1} parent=11 // pred_check
          %p124 = pneg %p80
        $region18: #{tpu_custom_call.1} parent=11 // pred_check_branch
          %126 = sbr.rel (%p124) target = $region20
        $region19: #{tpu_custom_call.1} parent=11 // pred_region
          _
        $region20: #{tpu_custom_call.1} parent=11 // pred_fallthru
          _
      $region12: #{tpu_custom_call.1} parent=5 // pred_fallthru
        _
      %p127 = scmp.lt.s32.totalorder %s12, 2
      // Predicated region
      $region21: #{tpu_custom_call.1} parent=5 // pred_check
        %p128 = pneg %p127
      $region22: #{tpu_custom_call.1} parent=5 // pred_check_branch
        %130 = sbr.rel (%p128) target = $region24
      $region23: #{tpu_custom_call.1} parent=5 // pred_region
        // Predicated region
        $region25: #{tpu_custom_call.1} parent=23 // pred_check
          %p131 = pneg %p32
        $region26: #{tpu_custom_call.1} parent=23 // pred_check_branch
          %133 = sbr.rel (%p131) target = $region28
        $region27: #{tpu_custom_call.1} parent=23 // pred_region
          %s134 = smul.u32 16, %s12
          %p135 = scmp.lt.s32.totalorder %s134, 31
          %s136 = scalar_select %p135, %s134, 31
          %s137 = smul.addr %s136, 8
          %s138 = scalar_lea.vmem %s0, %s137
          %s139 = smul.u32 16, %s12
        $region28: #{tpu_custom_call.1} parent=23 // pred_fallthru
          _
      $region24: #{tpu_custom_call.1} parent=5 // pred_fallthru
        _
      %p140 = scmp.le.s32.totalorder 1, %s12
      %p141 = scmp.lt.s32.totalorder %s12, 3
      %p142 = pnand %p140, %p141
      %p143 = pneg %p142
      // Predicated region
      $region29: #{tpu_custom_call.1} parent=5 // pred_check
        _
      $region30: #{tpu_custom_call.1} parent=5 // pred_check_branch
        %145 = sbr.rel (%p142) target = $region32
      $region31: #{tpu_custom_call.1} parent=5 // pred_region
        %s146 = ssub.s32 %s12, 1
        %s147 = smul.u32 16, %s17
        %p148 = scmp.lt.s32.totalorder %s147, 31
        %s149 = scalar_select %p148, %s147, 31
        %s150 = smul.addr %s149, 8
        %s151 = scalar_lea.vmem %s0, %s150
        %p152 = pneg %p38
        %p153 = pneg %p35
        %p154 = pneg %p59
        %p155 = pneg %p56
        %p156 = pneg %p80
        %p157 = pneg %p77
        %p158 = pneg %p106
        %p159 = pneg %p103
        %s160 = sand.u32 %s93, 1
        %s161 = scalar_lea.sflag [#allocation3], %s160
        %s162 = sand.u32 %s93, 1
        %s163 = smul.addr %s162, 128
        %s164 = scalar_lea.vmem [#allocation2], %s163
        %s165 = smul.u32 16, %s17
        %p166 = scmp.lt.s32.totalorder %s165, 31
        %s167 = scalar_select %p166, %s165, 31
        %s168 = smul.addr %s167, 8
        %s169 = scalar_lea.vmem %s0, %s168
        %s170 = smul.u32 16, %s17
        %s171 = smul.u32 16, %s17
        %v172 = vld [vmem:[%s169] sm:$0xff]
        %v173 = vld [vmem:[%s169 + $0x8] sm:$0xff]
        %v174 = vld [vmem:[%s169 + $0x10] sm:$0xff]
        %v175 = vld [vmem:[%s169 + $0x18] sm:$0xff]
        %v176 = vld [vmem:[%s169 + $0x20] sm:$0xff]
        %v177 = vld [vmem:[%s169 + $0x28] sm:$0xff]
        %v178 = vld [vmem:[%s169 + $0x30] sm:$0xff]
        %v179 = vld [vmem:[%s169 + $0x38] sm:$0xff]
        %v180 = vld [vmem:[%s169 + $0x40] sm:$0xff]
        %v181 = vld [vmem:[%s169 + $0x48] sm:$0xff]
        %v182 = vld [vmem:[%s169 + $0x50] sm:$0xff]
        %v183 = vld [vmem:[%s169 + $0x58] sm:$0xff]
        %v184 = vld [vmem:[%s169 + $0x60] sm:$0xff]
        %v185 = vld [vmem:[%s169 + $0x68] sm:$0xff]
        %v186 = vld [vmem:[%s169 + $0x70] sm:$0xff]
        %v187 = vld [vmem:[%s169 + $0x78] sm:$0xff]
        %v188 = vld [vmem:[%s1] sm:$0xff]
        %v189 = vld [vmem:[%s1 + $0x8] sm:$0xff]
        %v190 = vld [vmem:[%s1 + $0x10] sm:$0xff]
        %v191 = vld [vmem:[%s1 + $0x18] sm:$0xff]
        %v192 = vld [vmem:[%s1 + $0x20] sm:$0xff]
        %v193 = vld [vmem:[%s1 + $0x28] sm:$0xff]
        %v194 = vld [vmem:[%s1 + $0x30] sm:$0xff]
        %v195 = vld [vmem:[%s1 + $0x38] sm:$0xff]
        %v196 = vld [vmem:[%s1 + $0x40] sm:$0xff]
        %v197 = vld [vmem:[%s1 + $0x48] sm:$0xff]
        %v198 = vld [vmem:[%s1 + $0x50] sm:$0xff]
        %v199 = vld [vmem:[%s1 + $0x58] sm:$0xff]
        %v200 = vld [vmem:[%s1 + $0x60] sm:$0xff]
        %v201 = vld [vmem:[%s1 + $0x68] sm:$0xff]
        %v202 = vld [vmem:[%s1 + $0x70] sm:$0xff]
        %v203 = vld [vmem:[%s1 + $0x78] sm:$0xff]
        %v204 = vmul.f32 %v172, %v172
        %v205 = vmul.f32 %v173, %v173
        %v206 = vmul.f32 %v174, %v174
        %v207 = vmul.f32 %v175, %v175
        %v208 = vmul.f32 %v176, %v176
        %v209 = vmul.f32 %v177, %v177
        %v210 = vmul.f32 %v178, %v178
        %v211 = vmul.f32 %v179, %v179
        %v212 = vmul.f32 %v180, %v180
        %v213 = vmul.f32 %v181, %v181
        %v214 = vmul.f32 %v182, %v182
        %v215 = vmul.f32 %v183, %v183
        %v216 = vmul.f32 %v184, %v184
        %v217 = vmul.f32 %v185, %v185
        %v218 = vmul.f32 %v186, %v186
        %v219 = vmul.f32 %v187, %v187
        %vm220 = vcmask 523264
        %v221 = vsel %vm220, %v204, 0.0
        %222 = vadd.xlane.f32.xlu0 %v221
        %v223 = vpop.xlane.xlu0 %222
        %v224 = vsel %vm220, %v205, 0.0
        %225 = vadd.xlane.f32.xlu0 %v224
        %v226 = vpop.xlane.xlu0 %225
        %v227 = vsel %vm220, %v206, 0.0
        %228 = vadd.xlane.f32.xlu0 %v227
        %v229 = vpop.xlane.xlu0 %228
        %v230 = vsel %vm220, %v207, 0.0
        %231 = vadd.xlane.f32.xlu0 %v230
        %v232 = vpop.xlane.xlu0 %231
        %v233 = vsel %vm220, %v208, 0.0
        %234 = vadd.xlane.f32.xlu0 %v233
        %v235 = vpop.xlane.xlu0 %234
        %v236 = vsel %vm220, %v209, 0.0
        %237 = vadd.xlane.f32.xlu0 %v236
        %v238 = vpop.xlane.xlu0 %237
        %v239 = vsel %vm220, %v210, 0.0
        %240 = vadd.xlane.f32.xlu0 %v239
        %v241 = vpop.xlane.xlu0 %240
        %v242 = vsel %vm220, %v211, 0.0
        %243 = vadd.xlane.f32.xlu0 %v242
        %v244 = vpop.xlane.xlu0 %243
        %v245 = vsel %vm220, %v212, 0.0
        %246 = vadd.xlane.f32.xlu0 %v245
        %v247 = vpop.xlane.xlu0 %246
        %v248 = vsel %vm220, %v213, 0.0
        %249 = vadd.xlane.f32.xlu0 %v248
        %v250 = vpop.xlane.xlu0 %249
        %v251 = vsel %vm220, %v214, 0.0
        %252 = vadd.xlane.f32.xlu0 %v251
        %v253 = vpop.xlane.xlu0 %252
        %v254 = vsel %vm220, %v215, 0.0
        %255 = vadd.xlane.f32.xlu0 %v254
        %v256 = vpop.xlane.xlu0 %255
        %v257 = vsel %vm220, %v216, 0.0
        %258 = vadd.xlane.f32.xlu0 %v257
        %v259 = vpop.xlane.xlu0 %258
        %v260 = vsel %vm220, %v217, 0.0
        %261 = vadd.xlane.f32.xlu0 %v260
        %v262 = vpop.xlane.xlu0 %261
        %v263 = vsel %vm220, %v218, 0.0
        %264 = vadd.xlane.f32.xlu0 %v263
        %v265 = vpop.xlane.xlu0 %264
        %v266 = vsel %vm220, %v219, 0.0
        %267 = vadd.xlane.f32.xlu0 %v266
        %v268 = vpop.xlane.xlu0 %267
        %v269 = vmax.f32 %v223, 1e-12
        %v270 = vmax.f32 %v226, 1e-12
        %v271 = vmax.f32 %v229, 1e-12
        %v272 = vmax.f32 %v232, 1e-12
        %v273 = vmax.f32 %v235, 1e-12
        %v274 = vmax.f32 %v238, 1e-12
        %v275 = vmax.f32 %v241, 1e-12
        %v276 = vmax.f32 %v244, 1e-12
        %v277 = vmax.f32 %v247, 1e-12
        %v278 = vmax.f32 %v250, 1e-12
        %v279 = vmax.f32 %v253, 1e-12
        %v280 = vmax.f32 %v256, 1e-12
        %v281 = vmax.f32 %v259, 1e-12
        %v282 = vmax.f32 %v262, 1e-12
        %v283 = vmax.f32 %v265, 1e-12
        %v284 = vmax.f32 %v268, 1e-12
        %v285 = vrsqrt.pop %v269
        %v286 = vrsqrt.pop %v270
        %v287 = vrsqrt.pop %v271
        %v288 = vrsqrt.pop %v272
        %v289 = vrsqrt.pop %v273
        %v290 = vrsqrt.pop %v274
        %v291 = vrsqrt.pop %v275
        %v292 = vrsqrt.pop %v276
        %v293 = vrsqrt.pop %v277
        %v294 = vrsqrt.pop %v278
        %v295 = vrsqrt.pop %v279
        %v296 = vrsqrt.pop %v280
        %v297 = vrsqrt.pop %v281
        %v298 = vrsqrt.pop %v282
        %v299 = vrsqrt.pop %v283
        %v300 = vrsqrt.pop %v284
        %v302 = vsel %vm220, %v172, 0
        %v305 = vsel %vm220, %v173, 0
        %v308 = vsel %vm220, %v174, 0
        %v311 = vsel %vm220, %v175, 0
        %v314 = vsel %vm220, %v176, 0
        %v317 = vsel %vm220, %v177, 0
        %v320 = vsel %vm220, %v178, 0
        %v323 = vsel %vm220, %v179, 0
        %v326 = vsel %vm220, %v180, 0
        %v329 = vsel %vm220, %v181, 0
        %v332 = vsel %vm220, %v182, 0
        %v335 = vsel %vm220, %v183, 0
        %v338 = vsel %vm220, %v184, 0
        %v341 = vsel %vm220, %v185, 0
        %v344 = vsel %vm220, %v186, 0
        %v347 = vsel %vm220, %v187, 0
        %349 = vmatprep.subr.mxu0 %v189
        %350 = vmatpush1.msra.mxu0 %v188
        %351 = vmatprep.subr.mxu0 %v191
        %352 = vmatpush1.msra.mxu0 %v190
        %353 = vmatprep.subr.mxu0 %v193
        %354 = vmatpush1.msra.mxu0 %v192
        %355 = vmatprep.subr.mxu0 %v195
        %356 = vmatpush1.msra.mxu0 %v194
        %357 = vmatprep.subr.mxu0 %v197
        %358 = vmatpush1.msra.mxu0 %v196
        %359 = vmatprep.subr.mxu0 %v199
        %360 = vmatpush1.msra.mxu0 %v198
        %361 = vmatprep.subr.mxu0 %v201
        %362 = vmatpush1.msra.mxu0 %v200
        %363 = vmatprep.subr.mxu0 %v203
        %364 = vmatpush1.msra.mxu0 %v202
        %365 = vmatprep.subr.mxu0 0.0
        %366 = vmatpush1.msra.mxu0 0.0
        %367 = vmatprep.subr.mxu0 0.0
        %368 = vmatpush1.msra.mxu0 0.0
        %369 = vmatprep.subr.mxu0 0.0
        %370 = vmatpush1.msra.mxu0 0.0
        %371 = vmatprep.subr.mxu0 0.0
        %372 = vmatpush1.msra.mxu0 0.0
        %373 = vmatprep.subr.mxu0 0.0
        %374 = vmatpush1.msra.mxu0 0.0
        %375 = vmatprep.subr.mxu0 0.0
        %376 = vmatpush1.msra.mxu0 0.0
        %377 = vmatprep.subr.mxu0 0.0
        %378 = vmatpush1.msra.mxu0 0.0
        %379 = vmatprep.subr.mxu0 0.0
        %380 = vmatpush1.msra.mxu0 0.0
        %381 = vmatprep.subr.mxu0 0.0
        %382 = vmatpush1.msra.mxu0 0.0
        %383 = vmatprep.subr.mxu0 0.0
        %384 = vmatpush1.msra.mxu0 0.0
        %385 = vmatprep.subr.mxu0 0.0
        %386 = vmatpush1.msra.mxu0 0.0
        %387 = vmatprep.subr.mxu0 0.0
        %388 = vmatpush1.msra.mxu0 0.0
        %389 = vmatprep.subr.mxu0 0.0
        %390 = vmatpush1.msra.mxu0 0.0
        %391 = vmatprep.subr.mxu0 0.0
        %392 = vmatpush1.msra.mxu0 0.0
        %393 = vmatprep.subr.mxu0 0.0
        %394 = vmatpush1.msra.mxu0 0.0
        %395 = vmatprep.subr.mxu0 0.0
        %396 = vmatpush1.msra.mxu0 0.0
        %397 = vmatprep.subr.mxu0 0.0
        %398 = vmatpush1.msra.mxu0 0.0
        %399 = vmatprep.subr.mxu0 0.0
        %400 = vmatpush1.msra.mxu0 0.0
        %401 = vmatprep.subr.mxu0 0.0
        %402 = vmatpush1.msra.mxu0 0.0
        %403 = vmatprep.subr.mxu0 0.0
        %404 = vmatpush1.msra.mxu0 0.0
        %405 = vmatprep.subr.mxu0 0.0
        %406 = vmatpush1.msra.mxu0 0.0
        %407 = vmatprep.subr.mxu0 0.0
        %408 = vmatpush1.msra.mxu0 0.0
        %409 = vmatprep.subr.mxu0 0.0
        %410 = vmatpush1.msra.mxu0 0.0
        %411 = vmatprep.subr.mxu0 0.0
        %412 = vmatpush1.msra.mxu0 0.0
        %413 = vmatprep.mubr.f32.mxu0 0.0
        %414 = vmatmul.mubr.f32.gmra.mrb[0].mxu0 %v302
        %v415 = vpop.f32.mrb[0].mxu0
        %v416 = vadd.f32 0.0, %v415
        %v417 = vpop.f32.mrb[0].mxu0
        %v418 = vadd.f32 0.0, %v417
        %419 = vmatprep.mubr.f32.mxu0 0.0
        %420 = vmatmul.mubr.f32.gmra.mrb[0].mxu0 %v305
        %v421 = vpop.f32.mrb[0].mxu0
        %v422 = vadd.f32 0.0, %v421
        %v423 = vpop.f32.mrb[0].mxu0
        %v424 = vadd.f32 0.0, %v423
        %425 = vmatprep.mubr.f32.mxu0 0.0
        %426 = vmatmul.mubr.f32.gmra.mrb[0].mxu0 %v308
        %v427 = vpop.f32.mrb[0].mxu0
        %v428 = vadd.f32 0.0, %v427
        %v429 = vpop.f32.mrb[0].mxu0
        %v430 = vadd.f32 0.0, %v429
        %431 = vmatprep.mubr.f32.mxu0 0.0
        %432 = vmatmul.mubr.f32.gmra.mrb[0].mxu0 %v311
        %v433 = vpop.f32.mrb[0].mxu0
        %v434 = vadd.f32 0.0, %v433
        %v435 = vpop.f32.mrb[0].mxu0
        %v436 = vadd.f32 0.0, %v435
        %437 = vmatprep.mubr.f32.mxu0 0.0
        %438 = vmatmul.mubr.f32.gmra.mrb[0].mxu0 %v314
        %v439 = vpop.f32.mrb[0].mxu0
        %v440 = vadd.f32 0.0, %v439
        %v441 = vpop.f32.mrb[0].mxu0
        %v442 = vadd.f32 0.0, %v441
        %443 = vmatprep.mubr.f32.mxu0 0.0
        %444 = vmatmul.mubr.f32.gmra.mrb[0].mxu0 %v317
        %v445 = vpop.f32.mrb[0].mxu0
        %v446 = vadd.f32 0.0, %v445
        %v447 = vpop.f32.mrb[0].mxu0
        %v448 = vadd.f32 0.0, %v447
        %449 = vmatprep.mubr.f32.mxu0 0.0
        %450 = vmatmul.mubr.f32.gmra.mrb[0].mxu0 %v320
        %v451 = vpop.f32.mrb[0].mxu0
        %v452 = vadd.f32 0.0, %v451
        %v453 = vpop.f32.mrb[0].mxu0
        %v454 = vadd.f32 0.0, %v453
        %455 = vmatprep.mubr.f32.mxu0 0.0
        %456 = vmatmul.mubr.f32.gmra.mrb[0].mxu0 %v323
        %v457 = vpop.f32.mrb[0].mxu0
        %v458 = vadd.f32 0.0, %v457
        %v459 = vpop.f32.mrb[0].mxu0
        %v460 = vadd.f32 0.0, %v459
        %461 = vmatprep.mubr.f32.mxu0 0.0
        %462 = vmatmul.mubr.f32.gmra.mrb[0].mxu0 %v326
        %v463 = vpop.f32.mrb[0].mxu0
        %v464 = vadd.f32 0.0, %v463
        %v465 = vpop.f32.mrb[0].mxu0
        %v466 = vadd.f32 0.0, %v465
        %467 = vmatprep.mubr.f32.mxu0 0.0
        %468 = vmatmul.mubr.f32.gmra.mrb[0].mxu0 %v329
        %v469 = vpop.f32.mrb[0].mxu0
        %v470 = vadd.f32 0.0, %v469
        %v471 = vpop.f32.mrb[0].mxu0
        %v472 = vadd.f32 0.0, %v471
        %473 = vmatprep.mubr.f32.mxu0 0.0
        %474 = vmatmul.mubr.f32.gmra.mrb[0].mxu0 %v332
        %v475 = vpop.f32.mrb[0].mxu0
        %v476 = vadd.f32 0.0, %v475
        %v477 = vpop.f32.mrb[0].mxu0
        %v478 = vadd.f32 0.0, %v477
        %479 = vmatprep.mubr.f32.mxu0 0.0
        %480 = vmatmul.mubr.f32.gmra.mrb[0].mxu0 %v335
        %v481 = vpop.f32.mrb[0].mxu0
        %v482 = vadd.f32 0.0, %v481
        %v483 = vpop.f32.mrb[0].mxu0
        %v484 = vadd.f32 0.0, %v483
        %485 = vmatprep.mubr.f32.mxu0 0.0
        %486 = vmatmul.mubr.f32.gmra.mrb[0].mxu0 %v338
        %v487 = vpop.f32.mrb[0].mxu0
        %v488 = vadd.f32 0.0, %v487
        %v489 = vpop.f32.mrb[0].mxu0
        %v490 = vadd.f32 0.0, %v489
        %491 = vmatprep.mubr.f32.mxu0 0.0
        %492 = vmatmul.mubr.f32.gmra.mrb[0].mxu0 %v341
        %v493 = vpop.f32.mrb[0].mxu0
        %v494 = vadd.f32 0.0, %v493
        %v495 = vpop.f32.mrb[0].mxu0
        %v496 = vadd.f32 0.0, %v495
        %497 = vmatprep.mubr.f32.mxu0 0.0
        %498 = vmatmul.mubr.f32.gmra.mrb[0].mxu0 %v344
        %v499 = vpop.f32.mrb[0].mxu0
        %v500 = vadd.f32 0.0, %v499
        %v501 = vpop.f32.mrb[0].mxu0
        %v502 = vadd.f32 0.0, %v501
        %503 = vmatprep.mubr.f32.mxu0 0.0
        %504 = vmatmul.mubr.f32.gmra.mrb[0].mxu0 %v347
        %v505 = vpop.f32.mrb[0].mxu0
        %v506 = vadd.f32 0.0, %v505
        %v507 = vpop.f32.mrb[0].mxu0
        %v508 = vadd.f32 0.0, %v507
        %509 = vdwg.mxu0
        %v510 = vmul.f32 %v416, %v285
        %v511 = vmul.f32 %v418, %v285
        %v512 = vmul.f32 %v422, %v286
        %v513 = vmul.f32 %v424, %v286
        %v514 = vmul.f32 %v428, %v287
        %v515 = vmul.f32 %v430, %v287
        %v516 = vmul.f32 %v434, %v288
        %v517 = vmul.f32 %v436, %v288
        %v518 = vmul.f32 %v440, %v289
        %v519 = vmul.f32 %v442, %v289
        %v520 = vmul.f32 %v446, %v290
        %v521 = vmul.f32 %v448, %v290
        %v522 = vmul.f32 %v452, %v291
        %v523 = vmul.f32 %v454, %v291
        %v524 = vmul.f32 %v458, %v292
        %v525 = vmul.f32 %v460, %v292
        %v526 = vmul.f32 %v464, %v293
        %v527 = vmul.f32 %v466, %v293
        %v528 = vmul.f32 %v470, %v294
        %v529 = vmul.f32 %v472, %v294
        %v530 = vmul.f32 %v476, %v295
        %v531 = vmul.f32 %v478, %v295
        %v532 = vmul.f32 %v482, %v296
        %v533 = vmul.f32 %v484, %v296
        %v534 = vmul.f32 %v488, %v297
        %v535 = vmul.f32 %v490, %v297
        %v536 = vmul.f32 %v494, %v298
        %v537 = vmul.f32 %v496, %v298
        %v538 = vmul.f32 %v500, %v299
        %v539 = vmul.f32 %v502, %v299
        %v540 = vmul.f32 %v506, %v300
        %v541 = vmul.f32 %v508, %v300
        %v542 = vld [vmem:[%s2] sm:$0x3]
        %v544 = vlaneseq
        %v545 = vshrl.u32 %v544, 7
        %v546 = vsub.s32 0, %v545
        %v547 = vrot.slane %v542, %v546
        %v548 = vlaneseq
        %v549 = vshrl.u32 %v548, 7
        %v550 = vsub.s32 1, %v549
        %v551 = vrot.slane %v542, %v550
        %v554 = vmul.f32 %v510, %v547
        %v555 = vmul.f32 %v511, %v551
        %v556 = vmul.f32 %v512, %v547
        %v557 = vmul.f32 %v513, %v551
        %v558 = vmul.f32 %v514, %v547
        %v559 = vmul.f32 %v515, %v551
        %v560 = vmul.f32 %v516, %v547
        %v561 = vmul.f32 %v517, %v551
        %v562 = vmul.f32 %v518, %v547
        %v563 = vmul.f32 %v519, %v551
        %v564 = vmul.f32 %v520, %v547
        %v565 = vmul.f32 %v521, %v551
        %v566 = vmul.f32 %v522, %v547
        %v567 = vmul.f32 %v523, %v551
        %v568 = vmul.f32 %v524, %v547
        %v569 = vmul.f32 %v525, %v551
        %v570 = vmul.f32 %v526, %v547
        %v571 = vmul.f32 %v527, %v551
        %v572 = vmul.f32 %v528, %v547
        %v573 = vmul.f32 %v529, %v551
        %v574 = vmul.f32 %v530, %v547
        %v575 = vmul.f32 %v531, %v551
        %v576 = vmul.f32 %v532, %v547
        %v577 = vmul.f32 %v533, %v551
        %v578 = vmul.f32 %v534, %v547
        %v579 = vmul.f32 %v535, %v551
        %v580 = vmul.f32 %v536, %v547
        %v581 = vmul.f32 %v537, %v551
        %v582 = vmul.f32 %v538, %v547
        %v583 = vmul.f32 %v539, %v551
        %v584 = vmul.f32 %v540, %v547
        %v585 = vmul.f32 %v541, %v551
        %v586 = vmax.f32 %v554, %v555
        %v587 = vmax.f32 %v556, %v557
        %v588 = vmax.f32 %v558, %v559
        %v589 = vmax.f32 %v560, %v561
        %v590 = vmax.f32 %v562, %v563
        %v591 = vmax.f32 %v564, %v565
        %v592 = vmax.f32 %v566, %v567
        %v593 = vmax.f32 %v568, %v569
        %v594 = vmax.f32 %v570, %v571
        %v595 = vmax.f32 %v572, %v573
        %v596 = vmax.f32 %v574, %v575
        %v597 = vmax.f32 %v576, %v577
        %v598 = vmax.f32 %v578, %v579
        %v599 = vmax.f32 %v580, %v581
        %v600 = vmax.f32 %v582, %v583
        %v601 = vmax.f32 %v584, %v585
        %v602 = vsub.f32 %v554, %v586
        %v603 = vsub.f32 %v556, %v587
        %v604 = vsub.f32 %v558, %v588
        %v605 = vsub.f32 %v560, %v589
        %v606 = vsub.f32 %v562, %v590
        %v607 = vsub.f32 %v564, %v591
        %v608 = vsub.f32 %v566, %v592
        %v609 = vsub.f32 %v568, %v593
        %v610 = vsub.f32 %v570, %v594
        %v611 = vsub.f32 %v572, %v595
        %v612 = vsub.f32 %v574, %v596
        %v613 = vsub.f32 %v576, %v597
        %v614 = vsub.f32 %v578, %v598
        %v615 = vsub.f32 %v580, %v599
        %v616 = vsub.f32 %v582, %v600
        %v617 = vsub.f32 %v584, %v601
        %v618 = vmul.f32 %v602, 10.0
        %v619 = vmul.f32 %v603, 10.0
        %v620 = vmul.f32 %v604, 10.0
        %v621 = vmul.f32 %v605, 10.0
        %v622 = vmul.f32 %v606, 10.0
        %v623 = vmul.f32 %v607, 10.0
        %v624 = vmul.f32 %v608, 10.0
        %v625 = vmul.f32 %v609, 10.0
        %v626 = vmul.f32 %v610, 10.0
        %v627 = vmul.f32 %v611, 10.0
        %v628 = vmul.f32 %v612, 10.0
        %v629 = vmul.f32 %v613, 10.0
        %v630 = vmul.f32 %v614, 10.0
        %v631 = vmul.f32 %v615, 10.0
        %v632 = vmul.f32 %v616, 10.0
        %v633 = vmul.f32 %v617, 10.0
        %v634 = vmul.f32 %v618, 1.442695
        %v635 = vpow.pop %v634
        %v636 = vmul.f32 %v619, 1.442695
        %v637 = vpow.pop %v636
        %v638 = vmul.f32 %v620, 1.442695
        %v639 = vpow.pop %v638
        %v640 = vmul.f32 %v621, 1.442695
        %v641 = vpow.pop %v640
        %v642 = vmul.f32 %v622, 1.442695
        %v643 = vpow.pop %v642
        %v644 = vmul.f32 %v623, 1.442695
        %v645 = vpow.pop %v644
        %v646 = vmul.f32 %v624, 1.442695
        %v647 = vpow.pop %v646
        %v648 = vmul.f32 %v625, 1.442695
        %v649 = vpow.pop %v648
        %v650 = vmul.f32 %v626, 1.442695
        %v651 = vpow.pop %v650
        %v652 = vmul.f32 %v627, 1.442695
        %v653 = vpow.pop %v652
        %v654 = vmul.f32 %v628, 1.442695
        %v655 = vpow.pop %v654
        %v656 = vmul.f32 %v629, 1.442695
        %v657 = vpow.pop %v656
        %v658 = vmul.f32 %v630, 1.442695
        %v659 = vpow.pop %v658
        %v660 = vmul.f32 %v631, 1.442695
        %v661 = vpow.pop %v660
        %v662 = vmul.f32 %v632, 1.442695
        %v663 = vpow.pop %v662
        %v664 = vmul.f32 %v633, 1.442695
        %v665 = vpow.pop %v664
        %v666 = vadd.f32 %v635, 0.0
        %v667 = vadd.f32 %v637, 0.0
        %v668 = vadd.f32 %v639, 0.0
        %v669 = vadd.f32 %v641, 0.0
        %v670 = vadd.f32 %v643, 0.0
        %v671 = vadd.f32 %v645, 0.0
        %v672 = vadd.f32 %v647, 0.0
        %v673 = vadd.f32 %v649, 0.0
        %v674 = vadd.f32 %v651, 0.0
        %v675 = vadd.f32 %v653, 0.0
        %v676 = vadd.f32 %v655, 0.0
        %v677 = vadd.f32 %v657, 0.0
        %v678 = vadd.f32 %v659, 0.0
        %v679 = vadd.f32 %v661, 0.0
        %v680 = vadd.f32 %v663, 0.0
        %v681 = vadd.f32 %v665, 0.0
        %v682 = vmul.f32 %v635, %v554
        %v683 = vmul.f32 %v637, %v556
        %v684 = vmul.f32 %v639, %v558
        %v685 = vmul.f32 %v641, %v560
        %v686 = vmul.f32 %v643, %v562
        %v687 = vmul.f32 %v645, %v564
        %v688 = vmul.f32 %v647, %v566
        %v689 = vmul.f32 %v649, %v568
        %v690 = vmul.f32 %v651, %v570
        %v691 = vmul.f32 %v653, %v572
        %v692 = vmul.f32 %v655, %v574
        %v693 = vmul.f32 %v657, %v576
        %v694 = vmul.f32 %v659, %v578
        %v695 = vmul.f32 %v661, %v580
        %v696 = vmul.f32 %v663, %v582
        %v697 = vmul.f32 %v665, %v584
        %v698 = vadd.f32 %v682, 0.0
        %v699 = vadd.f32 %v683, 0.0
        %v700 = vadd.f32 %v684, 0.0
        %v701 = vadd.f32 %v685, 0.0
        %v702 = vadd.f32 %v686, 0.0
        %v703 = vadd.f32 %v687, 0.0
        %v704 = vadd.f32 %v688, 0.0
        %v705 = vadd.f32 %v689, 0.0
        %v706 = vadd.f32 %v690, 0.0
        %v707 = vadd.f32 %v691, 0.0
        %v708 = vadd.f32 %v692, 0.0
        %v709 = vadd.f32 %v693, 0.0
        %v710 = vadd.f32 %v694, 0.0
        %v711 = vadd.f32 %v695, 0.0
        %v712 = vadd.f32 %v696, 0.0
        %v713 = vadd.f32 %v697, 0.0
        %v714 = vsub.f32 %v555, %v586
        %v715 = vsub.f32 %v557, %v587
        %v716 = vsub.f32 %v559, %v588
        %v717 = vsub.f32 %v561, %v589
        %v718 = vsub.f32 %v563, %v590
        %v719 = vsub.f32 %v565, %v591
        %v720 = vsub.f32 %v567, %v592
        %v721 = vsub.f32 %v569, %v593
        %v722 = vsub.f32 %v571, %v594
        %v723 = vsub.f32 %v573, %v595
        %v724 = vsub.f32 %v575, %v596
        %v725 = vsub.f32 %v577, %v597
        %v726 = vsub.f32 %v579, %v598
        %v727 = vsub.f32 %v581, %v599
        %v728 = vsub.f32 %v583, %v600
        %v729 = vsub.f32 %v585, %v601
        %v730 = vmul.f32 %v714, 10.0
        %v731 = vmul.f32 %v715, 10.0
        %v732 = vmul.f32 %v716, 10.0
        %v733 = vmul.f32 %v717, 10.0
        %v734 = vmul.f32 %v718, 10.0
        %v735 = vmul.f32 %v719, 10.0
        %v736 = vmul.f32 %v720, 10.0
        %v737 = vmul.f32 %v721, 10.0
        %v738 = vmul.f32 %v722, 10.0
        %v739 = vmul.f32 %v723, 10.0
        %v740 = vmul.f32 %v724, 10.0
        %v741 = vmul.f32 %v725, 10.0
        %v742 = vmul.f32 %v726, 10.0
        %v743 = vmul.f32 %v727, 10.0
        %v744 = vmul.f32 %v728, 10.0
        %v745 = vmul.f32 %v729, 10.0
        %v746 = vmul.f32 %v730, 1.442695
        %v747 = vpow.pop %v746
        %v748 = vmul.f32 %v731, 1.442695
        %v749 = vpow.pop %v748
        %v750 = vmul.f32 %v732, 1.442695
        %v751 = vpow.pop %v750
        %v752 = vmul.f32 %v733, 1.442695
        %v753 = vpow.pop %v752
        %v754 = vmul.f32 %v734, 1.442695
        %v755 = vpow.pop %v754
        %v756 = vmul.f32 %v735, 1.442695
        %v757 = vpow.pop %v756
        %v758 = vmul.f32 %v736, 1.442695
        %v759 = vpow.pop %v758
        %v760 = vmul.f32 %v737, 1.442695
        %v761 = vpow.pop %v760
        %v762 = vmul.f32 %v738, 1.442695
        %v763 = vpow.pop %v762
        %v764 = vmul.f32 %v739, 1.442695
        %v765 = vpow.pop %v764
        %v766 = vmul.f32 %v740, 1.442695
        %v767 = vpow.pop %v766
        %v768 = vmul.f32 %v741, 1.442695
        %v769 = vpow.pop %v768
        %v770 = vmul.f32 %v742, 1.442695
        %v771 = vpow.pop %v770
        %v772 = vmul.f32 %v743, 1.442695
        %v773 = vpow.pop %v772
        %v774 = vmul.f32 %v744, 1.442695
        %v775 = vpow.pop %v774
        %v776 = vmul.f32 %v745, 1.442695
        %v777 = vpow.pop %v776
        %v778 = vadd.f32 %v666, %v747
        %v779 = vadd.f32 %v667, %v749
        %v780 = vadd.f32 %v668, %v751
        %v781 = vadd.f32 %v669, %v753
        %v782 = vadd.f32 %v670, %v755
        %v783 = vadd.f32 %v671, %v757
        %v784 = vadd.f32 %v672, %v759
        %v785 = vadd.f32 %v673, %v761
        %v786 = vadd.f32 %v674, %v763
        %v787 = vadd.f32 %v675, %v765
        %v788 = vadd.f32 %v676, %v767
        %v789 = vadd.f32 %v677, %v769
        %v790 = vadd.f32 %v678, %v771
        %v791 = vadd.f32 %v679, %v773
        %v792 = vadd.f32 %v680, %v775
        %v793 = vadd.f32 %v681, %v777
        %v794 = vmul.f32 %v747, %v555
        %v795 = vmul.f32 %v749, %v557
        %v796 = vmul.f32 %v751, %v559
        %v797 = vmul.f32 %v753, %v561
        %v798 = vmul.f32 %v755, %v563
        %v799 = vmul.f32 %v757, %v565
        %v800 = vmul.f32 %v759, %v567
        %v801 = vmul.f32 %v761, %v569
        %v802 = vmul.f32 %v763, %v571
        %v803 = vmul.f32 %v765, %v573
        %v804 = vmul.f32 %v767, %v575
        %v805 = vmul.f32 %v769, %v577
        %v806 = vmul.f32 %v771, %v579
        %v807 = vmul.f32 %v773, %v581
        %v808 = vmul.f32 %v775, %v583
        %v809 = vmul.f32 %v777, %v585
        %v810 = vadd.f32 %v698, %v794
        %v811 = vadd.f32 %v699, %v795
        %v812 = vadd.f32 %v700, %v796
        %v813 = vadd.f32 %v701, %v797
        %v814 = vadd.f32 %v702, %v798
        %v815 = vadd.f32 %v703, %v799
        %v816 = vadd.f32 %v704, %v800
        %v817 = vadd.f32 %v705, %v801
        %v818 = vadd.f32 %v706, %v802
        %v819 = vadd.f32 %v707, %v803
        %v820 = vadd.f32 %v708, %v804
        %v821 = vadd.f32 %v709, %v805
        %v822 = vadd.f32 %v710, %v806
        %v823 = vadd.f32 %v711, %v807
        %v824 = vadd.f32 %v712, %v808
        %v825 = vadd.f32 %v713, %v809
        %v826 = vrcp.pop %v778
        %v827 = vrcp.pop %v779
        %v828 = vrcp.pop %v780
        %v829 = vrcp.pop %v781
        %v830 = vrcp.pop %v782
        %v831 = vrcp.pop %v783
        %v832 = vrcp.pop %v784
        %v833 = vrcp.pop %v785
        %v834 = vrcp.pop %v786
        %v835 = vrcp.pop %v787
        %v836 = vrcp.pop %v788
        %v837 = vrcp.pop %v789
        %v838 = vrcp.pop %v790
        %v839 = vrcp.pop %v791
        %v840 = vrcp.pop %v792
        %v841 = vrcp.pop %v793
        %v842 = vmul.f32 %v810, %v826
        %v843 = vmul.f32 %v811, %v827
        %v844 = vmul.f32 %v812, %v828
        %v845 = vmul.f32 %v813, %v829
        %v846 = vmul.f32 %v814, %v830
        %v847 = vmul.f32 %v815, %v831
        %v848 = vmul.f32 %v816, %v832
        %v849 = vmul.f32 %v817, %v833
        %v850 = vmul.f32 %v818, %v834
        %v851 = vmul.f32 %v819, %v835
        %v852 = vmul.f32 %v820, %v836
        %v853 = vmul.f32 %v821, %v837
        %v854 = vmul.f32 %v822, %v838
        %v855 = vmul.f32 %v823, %v839
        %v856 = vmul.f32 %v824, %v840
        %v857 = vmul.f32 %v825, %v841
        %858 = vst [vmem:[%s164] sm:$0xff] %v842
        %859 = vst [vmem:[%s164 + $0x8] sm:$0xff] %v843
        %860 = vst [vmem:[%s164 + $0x10] sm:$0xff] %v844
        %861 = vst [vmem:[%s164 + $0x18] sm:$0xff] %v845
        %862 = vst [vmem:[%s164 + $0x20] sm:$0xff] %v846
        %863 = vst [vmem:[%s164 + $0x28] sm:$0xff] %v847
        %864 = vst [vmem:[%s164 + $0x30] sm:$0xff] %v848
        %865 = vst [vmem:[%s164 + $0x38] sm:$0xff] %v849
        %866 = vst [vmem:[%s164 + $0x40] sm:$0xff] %v850
        %867 = vst [vmem:[%s164 + $0x48] sm:$0xff] %v851
        %868 = vst [vmem:[%s164 + $0x50] sm:$0xff] %v852
        %869 = vst [vmem:[%s164 + $0x58] sm:$0xff] %v853
        %870 = vst [vmem:[%s164 + $0x60] sm:$0xff] %v854
        %871 = vst [vmem:[%s164 + $0x68] sm:$0xff] %v855
        %872 = vst [vmem:[%s164 + $0x70] sm:$0xff] %v856
        %873 = vst [vmem:[%s164 + $0x78] sm:$0xff] %v857
        %s874 = sand.u32 %s93, 1
        %s875 = scalar_lea.sflag [#allocation3], %s874
        %s876 = sand.u32 %s93, 1
        %s877 = smul.addr %s876, 128
        %s878 = scalar_lea.vmem [#allocation2], %s877
        // Predicated region
        $region33: #{tpu_custom_call.1} parent=31 // pred_check
          %p879 = pneg %p103
        $region34: #{tpu_custom_call.1} parent=31 // pred_check_branch
          %881 = sbr.rel (%p879) target = $region36
        $region35: #{tpu_custom_call.1} parent=31 // pred_region
          %s882 = smul.u32 16, %s17
          %s884 = ssub.s32 2048, 2048
          %885 = vsyncadd %s875, %s884
          %s886 = smul.addr %s882, 128
          %s887 = scalar_lea.hbm %s3, %s886
          %s888 = sshll.u32 %s878, 4
          %s889 = int_to_ptr.vmem [resolvable:$true] %s888
          %894 = dma.vmem_to_hbm [thread:$0]  %s889, 2048, %s887, %s875, 128, 128, 8
        $region36: #{tpu_custom_call.1} parent=31 // pred_fallthru
          _
      $region32: #{tpu_custom_call.1} parent=5 // pred_fallthru
        _
      %p895 = scmp.le.s32.totalorder 2, %s12
      // Predicated region
      $region37: #{tpu_custom_call.1} parent=5 // pred_check
        %p896 = pneg %p895
      $region38: #{tpu_custom_call.1} parent=5 // pred_check_branch
        %898 = sbr.rel (%p896) target = $region40
      $region39: #{tpu_custom_call.1} parent=5 // pred_region
        %s899 = ssub.s32 %s12, 2
        // Predicated region
        $region41: #{tpu_custom_call.1} parent=39 // pred_check
          %p900 = pneg %p109
        $region42: #{tpu_custom_call.1} parent=39 // pred_check_branch
          %902 = sbr.rel (%p900) target = $region44
        $region43: #{tpu_custom_call.1} parent=39 // pred_region
          %s903 = sand.u32 %s94, 1
          %s904 = scalar_lea.sflag [#allocation3], %s903
          %s905 = sand.u32 %s94, 1
          %s906 = smul.addr %s905, 128
          %s907 = scalar_lea.vmem [#allocation2], %s906
          %908 = dma.done %s904, 2048
        $region44: #{tpu_custom_call.1} parent=39 // pred_fallthru
          _
      $region40: #{tpu_custom_call.1} parent=5 // pred_fallthru
        _
    $region6: #{tpu_custom_call.1} parent=1 // loop_footer
      %s16 = sadd.s32 1, %s12
    $region7: #{tpu_custom_call.1} parent=1 // loop_footer_branch
      %11 = sbr.rel target = $region3
    $region8: #{tpu_custom_call.1} parent=1 // loop_exit
      _
    %909 = vsyncpa [#allocation3], 1
    %s910 = scalar_lea.sflag [#allocation3], 1
    %911 = vsyncpa %s910, 1

</llo_original>
